<compile_context>
chip_gen: v7x
topology: tpu7x:2x2x1
jax: 0.10.0
libtpu: 0.0.40
codegen_flags: <defaults>
</compile_context>

<pallas_src>
import functools

import jax
import jax.numpy as jnp
from jax import lax
from jax.experimental import pallas as pl
from jax.experimental.pallas import tpu as pltpu

_LANE = 128      # lane width (last dim)
_SUBLANE = 8     # sublane width (second-to-last dim)


def _round_up(v, m):
    return ((v + m - 1) // m) * m


def _cdiv(a, b):
    return (a + b - 1) // b


@functools.lru_cache(maxsize=1)
def _vmem_capacity_bytes():
    """Physical VMEM per TensorCore; conservative fallback if the query fails."""
    try:
        cap = int(pltpu.get_tpu_info().vmem_capacity_bytes)
        if cap > 0:
            return cap
    except Exception:
        pass
    return 64 << 20          # conservative (v7x-sized) default


# ---------------------------------------------------------------------------
# Kernels
# ---------------------------------------------------------------------------

def _resident_kernel(x_ref, w1t_ref, w2t_ref, o_ref, *scratch, hidden_chunk,
                     num_chunks, compute_dtype):
    """One (block_m, Fp) row tile; weights fully VMEM-resident.

    x_ref  : (block_m, Fp)  input rows (original dtype)
    w1t_ref: (Fp, Hp)       resident weight (compute_dtype)
    w2t_ref: (Hp, Fp)       resident weight (compute_dtype)
    o_ref  : (block_m, Fp)
    scratch: () single-chunk, or (f32 (block_m, Fp) accumulator,)
    """
    x = x_ref[...]
    x_mxu = x.astype(compute_dtype)      # bf16 operands -> full MXU throughput

    if num_chunks == 1:
        h = jnp.dot(x_mxu, w1t_ref[...], preferred_element_type=jnp.float32)
        h = h * jax.nn.sigmoid(h)                         # SiLU in f32 (EUP)
        y = jnp.dot(h.astype(compute_dtype), w2t_ref[...],
                    preferred_element_type=jnp.float32)
        o_ref[...] = (x.astype(jnp.float32) + y).astype(o_ref.dtype)
    else:
        (acc_ref,) = scratch
        # Initialize the accumulator with the residual: saves one full-tile
        # zero store and the final load+add round-trip, and stops keeping a
        # separate f32 copy of x live across the chunk loop.
        acc_ref[...] = x.astype(jnp.float32)

        def chunk_body(c, carry):
            start = pl.multiple_of(c * hidden_chunk, hidden_chunk)
            h = jnp.dot(x_mxu, w1t_ref[:, pl.ds(start, hidden_chunk)],
                        preferred_element_type=jnp.float32)
            h = h * jax.nn.sigmoid(h)
            acc_ref[...] += jnp.dot(h.astype(compute_dtype),
                                    w2t_ref[pl.ds(start, hidden_chunk), :],
                                    preferred_element_type=jnp.float32)
            return carry

        lax.fori_loop(0, num_chunks, chunk_body, 0, unroll=True)
        o_ref[...] = acc_ref[...].astype(o_ref.dtype)


def _streamed_kernel(x_ref, w1t_ref, w2t_ref, o_ref, acc_ref, *, compute_dtype):
    """Large-F path: hidden dim on an 'arbitrary' grid axis, weight tiles
    streamed (double-buffered) through VMEM.

    Grid = (row tiles, hidden tiles).  The output block index is constant
    across the hidden axis, so o_ref / acc_ref stay resident across it.
    """
    k = pl.program_id(1)

    @pl.when(k == 0)
    def _():
        acc_ref[...] = x_ref[...].astype(jnp.float32)     # residual as init

    h = jnp.dot(x_ref[...].astype(compute_dtype), w1t_ref[...],
                preferred_element_type=jnp.float32)
    h = h * jax.nn.sigmoid(h)
    acc_ref[...] += jnp.dot(h.astype(compute_dtype), w2t_ref[...],
                            preferred_element_type=jnp.float32)

    @pl.when(k == pl.num_programs(1) - 1)
    def _():
        o_ref[...] = acc_ref[...].astype(o_ref.dtype)


# ---------------------------------------------------------------------------
# Weight prep and planning
# ---------------------------------------------------------------------------

def prepare_weights(w1, w2, compute_dtype=jnp.bfloat16):
    """One-time weight prep (call at model-load time, not per forward):
    transpose to row-major matmul layout, pad both dims to multiples of 128,
    cast to the MXU compute dtype.  Hidden is padded to round_up(2F, 128)."""
    features = w1.shape[1]
    hidden = 2 * features
    assert w1.shape == (hidden, features)
    assert w2.shape == (features, hidden)
    fp = _round_up(features, _LANE)
    hp = _round_up(hidden, _LANE)
    # TODO(synk): on v7x an fp8 weight variant (MXU-native) would halve
    # resident weight VMEM; needs accuracy validation, so not default.
    w1t = jnp.pad(w1.T.astype(compute_dtype),
                  ((0, fp - features), (0, hp - hidden)))      # (Fp, Hp)
    w2t = jnp.pad(w2.T.astype(compute_dtype),
                  ((0, hp - hidden), (0, fp - features)))      # (Hp, Fp)
    return w1t, w2t


def _largest_hidden_divisor(hp, max_chunk):
    """Largest multiple of 128 that divides hp and is <= max_chunk, or None."""
    c = min(hp, (int(max_chunk) // _LANE) * _LANE)
    while c >= _LANE:
        if hp % c == 0:
            return c
        c -= _LANE
    return None


def _plan_resident(m, fp, hp, x_bytes, w_bytes, weight_vmem, budget, block_m_req):
    """Pick (block_m, hidden_chunk, num_chunks) for the resident-weight path."""
    m_cap = _round_up(max(m, 1), _SUBLANE)
    if block_m_req is not None:
        candidates = [_round_up(min(block_m_req, m_cap), _SUBLANE)]
    else:
        candidates = [c for c in (2048, 1024, 512, 256, 128, 64, 32, 16, 8)
                      if c <= m_cap] or [_SUBLANE]
    # Pass 1: prefer single-chunk (whole hidden live, no accumulator RMW).
    for bm in candidates:
        base = (weight_vmem
                + 2 * 2 * bm * fp * x_bytes        # in/out tiles, double-buffered
                + bm * fp * (2 + 4))               # x_mxu (bf16) + f32 residual
        if base + bm * hp * (4 + 2) <= budget:     # f32 + bf16 h copies
            return bm, hp, 1
    # Pass 2: chunk the hidden dim with the largest chunk that fits.
    for bm in candidates:
        base = (weight_vmem + 2 * 2 * bm * fp * x_bytes
                + bm * fp * (2 + 4) + bm * fp * 4)  # + f32 accumulator
        rem = budget - base
        if rem > 0:
            chunk = _largest_hidden_divisor(hp, rem // (bm * (4 + 2)))
            if chunk is not None:
                return bm, chunk, hp // chunk
    return candidates[-1], _LANE, hp // _LANE       # last resort


def _plan_streamed(m, fp, hp, x_bytes, w_bytes, budget, block_m_req):
    """Pick (block_m, hidden_tile) for the streamed-weight path."""
    m_cap = _round_up(max(m, 1), _SUBLANE)
    if block_m_req is not None:
        candidates = [_round_up(min(block_m_req, m_cap), _SUBLANE)]
    else:
        candidates = [c for c in (512, 256, 128, 64, 32, 16, 8)
                      if c <= m_cap] or [_SUBLANE]
    for bm in candidates:
        base = (2 * 2 * bm * fp * x_bytes           # in/out tiles
                + bm * fp * 4                       # f32 accumulator scratch
                + bm * fp * (2 + 4))                # x_mxu + f32 residual
        rem = budget - base
        if rem <= 0:
            continue
        # Per hidden tile: double-buffered w1t/w2t tiles + f32/bf16 h copies.
        per_hk = 2 * 2 * fp * w_bytes + bm * (4 + 2)
        chunk = _largest_hidden_divisor(hp, rem // per_hk)
        if chunk is not None:
            return bm, chunk
    return candidates[-1], _LANE                    # last resort


# ---------------------------------------------------------------------------
# Forward
# ---------------------------------------------------------------------------

@functools.partial(jax.jit, static_argnames=("block_m", "compute_dtype"))
def residual_block_prepared(x, w1t_p, w2t_p, *, block_m=None,
                            compute_dtype=jnp.bfloat16):
    features = x.shape[-1]
    fp, hp = w1t_p.shape
    assert fp == _round_up(features, _LANE)
    assert hp == _round_up(2 * features, _LANE)
    assert w2t_p.shape == (hp, fp)

    orig_shape = x.shape
    x2d = x.reshape(-1, features)
    m = x2d.shape[0]

    x_bytes = jnp.dtype(x.dtype).itemsize
    w_bytes = jnp.dtype(compute_dtype).itemsize
    weight_vmem = 2 * fp * hp * w_bytes

    cap = _vmem_capacity_bytes()
    budget = max(cap * 3 // 4, 24 << 20)            # planning budget w/ headroom

    resident = weight_vmem * 2 <= budget            # room for weights + tiles

    if resident:
        bm, hidden_chunk, num_chunks = _plan_resident(
            m, fp, hp, x_bytes, w_bytes, weight_vmem, budget, block_m)
    else:
        bm, hidden_chunk = _plan_streamed(
            m, fp, hp, x_bytes, w_bytes, budget, block_m)
        num_chunks = hp // hidden_chunk

    # Give both v7x TensorCores work: at least 2 row tiles whenever M > 8.
    if block_m is None and m > _SUBLANE and _round_up(m, bm) // bm < 2:
        bm = _round_up(_cdiv(m, 2), _SUBLANE)

    m_pad = _round_up(m, bm)
    if m_pad != m or fp != features:
        x2d = jnp.pad(x2d, ((0, m_pad - m), (0, fp - features)))

    # TODO(synk): for mem-bound small-F shapes on v6e, a bf16-activation I/O
    # variant (caller opts in) would halve the HBM stream; not default since
    # it changes output dtype semantics.

    if resident:
        need = (weight_vmem + 2 * 2 * bm * fp * x_bytes + bm * fp * (2 + 4)
                + bm * hidden_chunk * (4 + 2)
                + (bm * fp * 4 if num_chunks > 1 else 0))
        kernel = functools.partial(
            _resident_kernel, hidden_chunk=hidden_chunk,
            num_chunks=num_chunks, compute_dtype=compute_dtype)
        grid = (m_pad // bm,)
        in_specs = [
            # Row tiles of x: pipelined over the grid.
            pl.BlockSpec((bm, fp), lambda i: (i, 0)),
            # Weights: whole-array resident in VMEM, single copy.
            pl.BlockSpec(memory_space=pltpu.MemorySpace.VMEM),
            pl.BlockSpec(memory_space=pltpu.MemorySpace.VMEM),
        ]
        out_specs = pl.BlockSpec((bm, fp), lambda i: (i, 0))
        scratch_shapes = ([] if num_chunks == 1
                          else [pltpu.VMEM((bm, fp), jnp.float32)])
        dim_sem = ("parallel",)
        bytes_accessed = 2 * m_pad * fp * x_bytes + weight_vmem
    else:
        num_k = hp // hidden_chunk
        need = (2 * 2 * fp * hidden_chunk * w_bytes
                + 2 * 2 * bm * fp * x_bytes
                + bm * fp * 4 + bm * fp * (2 + 4)
                + bm * hidden_chunk * (4 + 2))
        kernel = functools.partial(_streamed_kernel, compute_dtype=compute_dtype)
        grid = (m_pad // bm, num_k)
        in_specs = [
            pl.BlockSpec((bm, fp), lambda i, k: (i, 0)),
            pl.BlockSpec((fp, hidden_chunk), lambda i, k: (0, k)),
            pl.BlockSpec((hidden_chunk, fp), lambda i, k: (k, 0)),
        ]
        out_specs = pl.BlockSpec((bm, fp), lambda i, k: (i, 0))
        scratch_shapes = [pltpu.VMEM((bm, fp), jnp.float32)]
        dim_sem = ("parallel", "arbitrary")
        bytes_accessed = (2 * m_pad * fp * x_bytes
                          + (m_pad // bm) * weight_vmem)

    # Clamp the VMEM request below the physical per-core capacity.
    vmem_limit = int(min(max(need * 5 // 4 + (2 << 20), 32 << 20),
                         max(cap - (4 << 20), 32 << 20)))

    out2d = pl.pallas_call(
        kernel,
        out_shape=jax.ShapeDtypeStruct((m_pad, fp), x.dtype),
        grid_spec=pltpu.PrefetchScalarGridSpec(
            num_scalar_prefetch=0,
            grid=grid,
            in_specs=in_specs,
            out_specs=out_specs,
            scratch_shapes=scratch_shapes,
        ),
        compiler_params=pltpu.CompilerParams(
            dimension_semantics=dim_sem,
            vmem_limit_bytes=vmem_limit,
        ),
        cost_estimate=pl.CostEstimate(
            flops=2 * 2 * m_pad * fp * hp,            # two matmuls
            transcendentals=m_pad * hp,               # sigmoid
            bytes_accessed=int(bytes_accessed),
        ),
    )(x2d, w1t_p, w2t_p)

    return out2d[:m, :features].reshape(orig_shape)


def residual_block(x, w1, w2, *, block_m=None, compute_dtype=jnp.bfloat16):
    """ResidualBlock forward.  w1: [2F, F], w2: [F, 2F] (PyTorch out x in).
    In a serving loop, call prepare_weights() once and reuse the result."""
    w1t_p, w2t_p = prepare_weights(w1, w2, compute_dtype)
    return residual_block_prepared(x, w1t_p, w2t_p, block_m=block_m,
                                   compute_dtype=compute_dtype)


# ---------------------------------------------------------------------------
# References / test
# ---------------------------------------------------------------------------

def _reference(x, w1, w2):
    h = x @ w1.T
    h = h * jax.nn.sigmoid(h)
    return x + h @ w2.T


def _reference_bf16(x, w1, w2):
    # Same bf16-operand / f32-accumulate arithmetic the kernel performs.
    xb = x.astype(jnp.bfloat16)
    h = jnp.dot(xb, w1.T.astype(jnp.bfloat16),
                preferred_element_type=jnp.float32)
    h = h * jax.nn.sigmoid(h)
    y = jnp.dot(h.astype(jnp.bfloat16), w2.T.astype(jnp.bfloat16),
                preferred_element_type=jnp.float32)
    return x + y


if __name__ == "__main__":
    key = jax.random.PRNGKey(0)
    k_x, k_w1, k_w2 = jax.random.split(key, 3)

    batch, seq, features = 2, 8, 32

    x = jax.random.normal(k_x, (batch, seq, features), dtype=jnp.float32)
    # PyTorch Linear layouts: weight is [out_features, in_features].
    w1 = jax.random.normal(k_w1, (2 * features, features), dtype=jnp.float32) * 0.1
    w2 = jax.random.normal(k_w2, (features, 2 * features), dtype=jnp.float32) * 0.1

    out = residual_block(x, w1, w2)
    out = jax.block_until_ready(out)

    ref_f32 = _reference(x, w1, w2)
    ref_b16 = _reference_bf16(x, w1, w2)

    assert out.shape == x.shape
    assert out.dtype == x.dtype
    # Tight check vs a reference using the same bf16-operand arithmetic.
    assert jnp.allclose(out, ref_b16, atol=5e-3, rtol=5e-3), \
        "mismatch vs bf16-rounded reference"
    # Loose check vs the exact f32 PyTorch-equivalent reference (bf16 rounding).
    assert jnp.allclose(out, ref_f32, atol=5e-2, rtol=5e-2), \
        "mismatch vs f32 reference"

    print("KERNEL_OK")
</pallas_src>

<mosaic_0001>
module attributes {stable_mosaic.version = 11 : i64} {
  func.func @_resident_kernel(%arg0: i32, %arg1: memref<8x128xf32, #tpu.memory_space<vmem>>, %arg2: memref<128x128xbf16, #tpu.memory_space<vmem>>, %arg3: memref<128x128xbf16, #tpu.memory_space<vmem>>, %arg4: memref<8x128xf32, #tpu.memory_space<vmem>>) attributes {dimension_semantics = [#tpu.dimension_semantics<parallel>], iteration_bounds = array<i64: 2>, scalar_prefetch = 0 : i64, scratch_operands = 0 : i64, tpu.core_type = #tpu.core_type<tc>, window_params = [{transform_indices = @transform_0, window_bounds = array<i64: 8, 128>}, {pipeline_mode = #tpu.pipeline_mode<synchronous>, transform_indices = @transform_1, window_bounds = array<i64: 128, 128>}, {pipeline_mode = #tpu.pipeline_mode<synchronous>, transform_indices = @transform_2, window_bounds = array<i64: 128, 128>}, {transform_indices = @transform_3, window_bounds = array<i64: 8, 128>}]} {
    %c0 = arith.constant 0 : index
    %c0_0 = arith.constant 0 : index
    %0 = vector.load %arg1[%c0, %c0_0] : memref<8x128xf32, #tpu.memory_space<vmem>>, vector<8x128xf32>
    %1 = arith.truncf %0 : vector<8x128xf32> to vector<8x128xbf16>
    %c0_1 = arith.constant 0 : index
    %c0_2 = arith.constant 0 : index
    %2 = vector.load %arg2[%c0_1, %c0_2] : memref<128x128xbf16, #tpu.memory_space<vmem>>, vector<128x128xbf16>
    %cst = arith.constant dense<0.000000e+00> : vector<8x128xf32>
    %3 = tpu.matmul %1, %2, %cst {dimension_numbers = #tpu.dot_dimension_numbers<[1], [0], [0], [1], [0, 0, 1, 1], [], []>} : vector<8x128xbf16>, vector<128x128xbf16>, vector<8x128xf32> -> vector<8x128xf32>
    %4 = arith.negf %3 : vector<8x128xf32>
    %5 = math.exp %4 : vector<8x128xf32>
    %cst_3 = arith.constant 1.000000e+00 : f32
    %6 = vector.broadcast %cst_3 : f32 to vector<8x128xf32>
    %7 = arith.addf %6, %5 : vector<8x128xf32>
    %8 = arith.divf %6, %7 : vector<8x128xf32>
    %9 = arith.mulf %3, %8 : vector<8x128xf32>
    %10 = arith.truncf %9 : vector<8x128xf32> to vector<8x128xbf16>
    %c0_4 = arith.constant 0 : index
    %c0_5 = arith.constant 0 : index
    %11 = vector.load %arg3[%c0_4, %c0_5] : memref<128x128xbf16, #tpu.memory_space<vmem>>, vector<128x128xbf16>
    %cst_6 = arith.constant dense<0.000000e+00> : vector<8x128xf32>
    %12 = tpu.matmul %10, %11, %cst_6 {dimension_numbers = #tpu.dot_dimension_numbers<[1], [0], [0], [1], [0, 0, 1, 1], [], []>} : vector<8x128xbf16>, vector<128x128xbf16>, vector<8x128xf32> -> vector<8x128xf32>
    %13 = arith.addf %0, %12 : vector<8x128xf32>
    %c0_7 = arith.constant 0 : index
    %c0_8 = arith.constant 0 : index
    %14 = vector.load %arg4[%c0_7, %c0_8] : memref<8x128xf32, #tpu.memory_space<vmem>>, vector<8x128xf32>
    tpu.vector_store %arg4[%c0_7, %c0_8], %13 {strides = array<i32>} : memref<8x128xf32, #tpu.memory_space<vmem>>, vector<8x128xf32>,
    return
  }
  func.func @transform_0(%arg0: i32) -> (i32, i32) {
    %c0_i32 = arith.constant 0 : i32
    %c0_i32_0 = arith.constant 0 : i32
    return %arg0, %c0_i32 : i32, i32
  }
  func.func @transform_1(%arg0: i32) -> (i32, i32) {
    %c0_i32 = arith.constant 0 : i32
    %c0_i32_0 = arith.constant 0 : i32
    %c0_i32_1 = arith.constant 0 : i32
    return %c0_i32, %c0_i32_0 : i32, i32
  }
  func.func @transform_2(%arg0: i32) -> (i32, i32) {
    %c0_i32 = arith.constant 0 : i32
    %c0_i32_0 = arith.constant 0 : i32
    %c0_i32_1 = arith.constant 0 : i32
    return %c0_i32, %c0_i32_0 : i32, i32
  }
  func.func @transform_3(%arg0: i32) -> (i32, i32) {
    %c0_i32 = arith.constant 0 : i32
    %c0_i32_0 = arith.constant 0 : i32
    return %arg0, %c0_i32 : i32, i32
  }
}

</mosaic_0001>

<llo_original>
// kernel: residual_block_prepared.1
$region0: #{residual_block_prepared.1}
  #allocation0 [shape = 'u32[]', space=smem, size = 0x4, offset = 0x4, fixed_abs, tag = 'smem constant byte address 0x4 - core index']
  #allocation1 [shape = 'u32[144,128]{1,0:T(1,128)}', space=vmem, size = 0x12000, scoped, tag = 'internal scratch']
  %s0 = inlined_call_operand.vmem [shape: f32[16,128], index: 0, kind: input, shape index: {}]
  %s1 = inlined_call_operand.hbm [shape: bf16[128,128], index: 1, kind: input, shape index: {}]
  %s2 = inlined_call_operand.hbm [shape: bf16[128,128], index: 2, kind: input, shape index: {}]
  %s3 = inlined_call_operand.vmem [shape: f32[16,128], index: 3, kind: output, shape index: {}]
  %s4 = sld [smem:[#allocation0]]
  $region53: #{residual_block_prepared.1} parent=0
    _
  %s6 = ssub.s32 1, %s4
  %s7 = scalar_select 0, %s6, %s4
  $region1: #{residual_block_prepared.1} parent=0
    #allocation2 [shape = 'u8[32768]{0}', space=vmem, size = 0x8000, scoped, tag = 'input window, operand 1, single buffered']
    #allocation3 [shape = 's32[2]{0}', space=sflag, size = 0x8, scoped, tag = 'scoped memory for residual_block_prepared.1']
    #allocation4 [shape = 'u8[32768]{0}', space=vmem, size = 0x8000, scoped, tag = 'input window, operand 2, single buffered']
    #allocation5 [shape = 's32[1]{0}', space=sflag, size = 0x4, scoped, tag = 'scoped memory for residual_block_prepared.1']
    %8 = vsyncpa [#allocation3], 0
    %9 = vsyncpa [#allocation5], 0
    loop: start=0, step=1, limit=4
    $region2: #{residual_block_prepared.1} parent=1 // loop_pre_header
      _
    $region3: #{residual_block_prepared.1} parent=1 // loop_header
      %s11 = sphi 0, %s15
      %p12 = scmp.ge.s32.totalorder %s11, 4
      %s21 = sphi 0, %s23
      %s24 = sphi 0, %s21
      %s25 = sphi 0, %s24
      %s41 = sphi 0, %s25
      %s45 = sphi 0, %s45
      %s47 = sphi 0, %s45
      %s48 = sphi 0, %s47
      %s62 = sphi 0, %s48
      %s66 = sphi 0, %s66
      %s68 = sphi 0, %s66
      %s69 = sphi 0, %s68
      %s83 = sphi 0, %s69
      %s89 = sphi 0, %s91
      %s92 = sphi 0, %s89
      %s93 = sphi 0, %s92
      %s109 = sphi 0, %s93
    $region4: #{residual_block_prepared.1} parent=1 // loop_header_branch
      %14 = sbr.rel (%p12) target = $region8
    $region5: #{residual_block_prepared.1} parent=1 // loop_body
      %s16 = ssub.s32 %s11, 1
      %s17 = ssub.s32 %s11, 2
      %s18 = sadd.s32 %s11, 1
      %s19 = ssub.s32 %s11, %s18
      %p20 = scmp.eq.s32.totalorder %s19, 0
      %s22 = sadd.s32 %s21, 1
      %s23 = scalar_select %p20, %s21, %s22
      %p26 = pneg %p20
      %p27 = scmp.eq.s32.totalorder %s11, 1
      %p28 = por %p26, %p27
      %p29 = scmp.ne.s32.totalorder %s21, %s24
      %p30 = scmp.eq.s32.totalorder %s11, 0
      %p31 = por %p29, %p30
      %p32 = scmp.ne.s32.totalorder %s21, %s24
      %p33 = scmp.eq.s32.totalorder %s16, 1
      %p34 = por %p32, %p33
      %p35 = scmp.ne.s32.totalorder %s24, %s25
      %p36 = scmp.eq.s32.totalorder %s16, 0
      %p37 = por %p35, %p36
      %p38 = scmp.ne.s32.totalorder %s24, %s25
      %p39 = scmp.eq.s32.totalorder %s17, 1
      %p40 = por %p38, %p39
      %p42 = scmp.ne.s32.totalorder %s25, %s41
      %p43 = scmp.eq.s32.totalorder %s17, 0
      %p44 = por %p42, %p43
      %s46 = sadd.s32 %s45, 1
      %p49 = scmp.eq.s32.totalorder %s11, 1
      %p50 = scmp.ne.s32.totalorder %s45, %s47
      %p51 = scmp.eq.s32.totalorder %s11, 0
      %p52 = por %p50, %p51
      %p53 = scmp.ne.s32.totalorder %s45, %s47
      %p54 = scmp.eq.s32.totalorder %s16, 1
      %p55 = por %p53, %p54
      %p56 = scmp.ne.s32.totalorder %s47, %s48
      %p57 = scmp.eq.s32.totalorder %s16, 0
      %p58 = por %p56, %p57
      %p59 = scmp.ne.s32.totalorder %s47, %s48
      %p60 = scmp.eq.s32.totalorder %s17, 1
      %p61 = por %p59, %p60
      %p63 = scmp.ne.s32.totalorder %s48, %s62
      %p64 = scmp.eq.s32.totalorder %s17, 0
      %p65 = por %p63, %p64
      %s67 = sadd.s32 %s66, 1
      %p70 = scmp.eq.s32.totalorder %s11, 1
      %p71 = scmp.ne.s32.totalorder %s66, %s68
      %p72 = scmp.eq.s32.totalorder %s11, 0
      %p73 = por %p71, %p72
      %p74 = scmp.ne.s32.totalorder %s66, %s68
      %p75 = scmp.eq.s32.totalorder %s16, 1
      %p76 = por %p74, %p75
      %p77 = scmp.ne.s32.totalorder %s68, %s69
      %p78 = scmp.eq.s32.totalorder %s16, 0
      %p79 = por %p77, %p78
      %p80 = scmp.ne.s32.totalorder %s68, %s69
      %p81 = scmp.eq.s32.totalorder %s17, 1
      %p82 = por %p80, %p81
      %p84 = scmp.ne.s32.totalorder %s69, %s83
      %p85 = scmp.eq.s32.totalorder %s17, 0
      %p86 = por %p84, %p85
      %s87 = ssub.s32 %s11, %s18
      %p88 = scmp.eq.s32.totalorder %s87, 0
      %s90 = sadd.s32 %s89, 1
      %s91 = scalar_select %p88, %s89, %s90
      %p94 = pneg %p88
      %p95 = scmp.eq.s32.totalorder %s11, 1
      %p96 = por %p94, %p95
      %p97 = scmp.ne.s32.totalorder %s89, %s92
      %p98 = scmp.eq.s32.totalorder %s11, 0
      %p99 = por %p97, %p98
      %p100 = scmp.ne.s32.totalorder %s89, %s92
      %p101 = scmp.eq.s32.totalorder %s16, 1
      %p102 = por %p100, %p101
      %p103 = scmp.ne.s32.totalorder %s92, %s93
      %p104 = scmp.eq.s32.totalorder %s16, 0
      %p105 = por %p103, %p104
      %p106 = scmp.ne.s32.totalorder %s92, %s93
      %p107 = scmp.eq.s32.totalorder %s17, 1
      %p108 = por %p106, %p107
      %p110 = scmp.ne.s32.totalorder %s93, %s109
      %p111 = scmp.eq.s32.totalorder %s17, 0
      %p112 = por %p110, %p111
      %p113 = scmp.le.s32.totalorder 1, %s11
      %p114 = scmp.lt.s32.totalorder %s11, 3
      %p115 = pnand %p113, %p114
      %p116 = pneg %p115
      // Predicated region
      $region9: #{residual_block_prepared.1} parent=5 // pred_check
        _
      $region10: #{residual_block_prepared.1} parent=5 // pred_check_branch
        %118 = sbr.rel (%p115) target = $region12
      $region11: #{residual_block_prepared.1} parent=5 // pred_region
        %s119 = ssub.s32 %s11, 1
        // Predicated region
        $region13: #{residual_block_prepared.1} parent=11 // pred_check
          %p120 = pneg %p58
        $region14: #{residual_block_prepared.1} parent=11 // pred_check_branch
          %122 = sbr.rel (%p120) target = $region16
        $region15: #{residual_block_prepared.1} parent=11 // pred_region
          %s124 = ssub.s32 1024, 1024
          %125 = vsyncadd [#allocation3], %s124
          %s126 = sshll.u32 [#allocation2], 4
          %s127 = int_to_ptr.vmem [resolvable:$true] %s126
          %132 = dma.hbm_to_vmem [thread:$0]  %s1, 1024, %s127, [#allocation3], 64, 64, 4
        $region16: #{residual_block_prepared.1} parent=11 // pred_fallthru
          _
        // Predicated region
        $region17: #{residual_block_prepared.1} parent=11 // pred_check
          %p133 = pneg %p79
        $region18: #{residual_block_prepared.1} parent=11 // pred_check_branch
          %135 = sbr.rel (%p133) target = $region20
        $region19: #{residual_block_prepared.1} parent=11 // pred_region
          %s137 = ssub.s32 1024, 1024
          %138 = vsyncadd [#allocation5], %s137
          %s139 = sshll.u32 [#allocation4], 4
          %s140 = int_to_ptr.vmem [resolvable:$true] %s139
          %145 = dma.hbm_to_vmem [thread:$0]  %s2, 1024, %s140, [#allocation5], 64, 64, 4
        $region20: #{residual_block_prepared.1} parent=11 // pred_fallthru
          _
      $region12: #{residual_block_prepared.1} parent=5 // pred_fallthru
        _
      %p146 = scmp.lt.s32.totalorder %s11, 2
      // Predicated region
      $region21: #{residual_block_prepared.1} parent=5 // pred_check
        %p147 = pneg %p146
      $region22: #{residual_block_prepared.1} parent=5 // pred_check_branch
        %149 = sbr.rel (%p147) target = $region24
      $region23: #{residual_block_prepared.1} parent=5 // pred_region
        // Predicated region
        $region25: #{residual_block_prepared.1} parent=23 // pred_check
          %p150 = pneg %p31
        $region26: #{residual_block_prepared.1} parent=23 // pred_check_branch
          %152 = sbr.rel (%p150) target = $region28
        $region27: #{residual_block_prepared.1} parent=23 // pred_region
          %p153 = scmp.lt.s32.totalorder %s11, 1
          %s154 = scalar_select %p153, %s11, 1
          %s155 = smul.addr %s154, 8
          %s156 = scalar_lea.vmem %s0, %s155
        $region28: #{residual_block_prepared.1} parent=23 // pred_fallthru
          _
      $region24: #{residual_block_prepared.1} parent=5 // pred_fallthru
        _
      %p157 = scmp.le.s32.totalorder 1, %s11
      %p158 = scmp.lt.s32.totalorder %s11, 3
      %p159 = pnand %p157, %p158
      %p160 = pneg %p159
      // Predicated region
      $region29: #{residual_block_prepared.1} parent=5 // pred_check
        _
      $region30: #{residual_block_prepared.1} parent=5 // pred_check_branch
        %162 = sbr.rel (%p159) target = $region32
      $region31: #{residual_block_prepared.1} parent=5 // pred_region
        %s163 = ssub.s32 %s11, 1
        // Predicated region
        $region33: #{residual_block_prepared.1} parent=31 // pred_check
          %p164 = pneg %p58
        $region34: #{residual_block_prepared.1} parent=31 // pred_check_branch
          %166 = sbr.rel (%p164) target = $region36
        $region35: #{residual_block_prepared.1} parent=31 // pred_region
          %167 = dma.done [#allocation3], 1024
        $region36: #{residual_block_prepared.1} parent=31 // pred_fallthru
          _
        // Predicated region
        $region37: #{residual_block_prepared.1} parent=31 // pred_check
          %p168 = pneg %p79
        $region38: #{residual_block_prepared.1} parent=31 // pred_check_branch
          %170 = sbr.rel (%p168) target = $region40
        $region39: #{residual_block_prepared.1} parent=31 // pred_region
          %171 = dma.done [#allocation5], 1024
        $region40: #{residual_block_prepared.1} parent=31 // pred_fallthru
          _
        %p172 = scmp.lt.s32.totalorder %s16, 1
        %s173 = scalar_select %p172, %s16, 1
        %s174 = smul.addr %s173, 8
        %s175 = scalar_lea.vmem %s0, %s174
        %p176 = pneg %p37
        %p177 = pneg %p34
        %p178 = pneg %p58
        %p179 = pneg %p55
        %p180 = pneg %p79
        %p181 = pneg %p76
        %p182 = pneg %p105
        %p183 = pneg %p102
        %p184 = scmp.lt.s32.totalorder %s16, 1
        %s185 = scalar_select %p184, %s16, 1
        %s186 = smul.addr %s185, 8
        %s187 = scalar_lea.vmem %s3, %s186
        %p188 = scmp.lt.s32.totalorder %s16, 1
        %s189 = scalar_select %p188, %s16, 1
        %s190 = smul.addr %s189, 8
        %s191 = scalar_lea.vmem %s0, %s190
        %p192 = scmp.lt.s32.totalorder %s16, 1
        %s193 = scalar_select %p192, %s16, 1
        %s194 = smul.addr %s193, 8
        %s195 = scalar_lea.vmem %s3, %s194
        %v197 = vld [vmem:[%s191] sm:$0xff]
        %v198 = vpack.c.bf16 %v197, %v197
        %v199 = vld [vmem:[#allocation2] sm:$0xf]
        %v200 = vld [vmem:[#allocation2 + $0x4] sm:$0xf]
        %v201 = vld [vmem:[#allocation2 + $0x8] sm:$0xf]
        %v202 = vld [vmem:[#allocation2 + $0xc] sm:$0xf]
        %v203 = vld [vmem:[#allocation2 + $0x10] sm:$0xf]
        %v204 = vld [vmem:[#allocation2 + $0x14] sm:$0xf]
        %v205 = vld [vmem:[#allocation2 + $0x18] sm:$0xf]
        %v206 = vld [vmem:[#allocation2 + $0x1c] sm:$0xf]
        %v207 = vld [vmem:[#allocation2 + $0x20] sm:$0xf]
        %v208 = vld [vmem:[#allocation2 + $0x24] sm:$0xf]
        %v209 = vld [vmem:[#allocation2 + $0x28] sm:$0xf]
        %v210 = vld [vmem:[#allocation2 + $0x2c] sm:$0xf]
        %v211 = vld [vmem:[#allocation2 + $0x30] sm:$0xf]
        %v212 = vld [vmem:[#allocation2 + $0x34] sm:$0xf]
        %v213 = vld [vmem:[#allocation2 + $0x38] sm:$0xf]
        %v214 = vld [vmem:[#allocation2 + $0x3c] sm:$0xf]
        %v231 = vunpack.c.l.b16 %v199
        %v232 = vunpack.c.l.b16 %v200
        %v233 = vunpack.c.l.b16 %v201
        %v234 = vunpack.c.l.b16 %v202
        %v235 = vunpack.c.l.b16 %v203
        %v236 = vunpack.c.l.b16 %v204
        %v237 = vunpack.c.l.b16 %v205
        %v238 = vunpack.c.l.b16 %v206
        %v239 = vunpack.c.l.b16 %v207
        %v240 = vunpack.c.l.b16 %v208
        %v241 = vunpack.c.l.b16 %v209
        %v242 = vunpack.c.l.b16 %v210
        %v243 = vunpack.c.l.b16 %v211
        %v244 = vunpack.c.l.b16 %v212
        %v245 = vunpack.c.l.b16 %v213
        %v246 = vunpack.c.l.b16 %v214
        %v247 = vpack.c.b16 %v232, %v231
        %v248 = vpack.c.b16 %v234, %v233
        %v249 = vpack.c.b16 %v236, %v235
        %v250 = vpack.c.b16 %v238, %v237
        %v251 = vpack.c.b16 %v240, %v239
        %v252 = vpack.c.b16 %v242, %v241
        %v253 = vpack.c.b16 %v244, %v243
        %v254 = vpack.c.b16 %v246, %v245
        %263 = vmatprep.subr.bf16.mxu0 0
        %264 = vmatpush1.bf16.msra.mxu0 %v247
        %265 = vmatprep.subr.bf16.mxu0 0
        %266 = vmatpush1.bf16.msra.mxu0 %v248
        %267 = vmatprep.subr.bf16.mxu0 0
        %268 = vmatpush1.bf16.msra.mxu0 %v249
        %269 = vmatprep.subr.bf16.mxu0 0
        %270 = vmatpush1.bf16.msra.mxu0 %v250
        %271 = vmatprep.subr.bf16.mxu0 0
        %272 = vmatpush1.bf16.msra.mxu0 %v251
        %273 = vmatprep.subr.bf16.mxu0 0
        %274 = vmatpush1.bf16.msra.mxu0 %v252
        %275 = vmatprep.subr.bf16.mxu0 0
        %276 = vmatpush1.bf16.msra.mxu0 %v253
        %277 = vmatprep.subr.bf16.mxu0 0
        %278 = vmatpush1.bf16.msra.mxu0 %v254
        %279 = vmatprep.subr.bf16.mxu0 0
        %280 = vmatpush1.bf16.msra.mxu0 0
        %281 = vmatprep.subr.bf16.mxu0 0
        %282 = vmatpush1.bf16.msra.mxu0 0
        %283 = vmatprep.subr.bf16.mxu0 0
        %284 = vmatpush1.bf16.msra.mxu0 0
        %285 = vmatprep.subr.bf16.mxu0 0
        %286 = vmatpush1.bf16.msra.mxu0 0
        %287 = vmatprep.subr.bf16.mxu0 0
        %288 = vmatpush1.bf16.msra.mxu0 0
        %289 = vmatprep.subr.bf16.mxu0 0
        %290 = vmatpush1.bf16.msra.mxu0 0
        %291 = vmatprep.subr.bf16.mxu0 0
        %292 = vmatpush1.bf16.msra.mxu0 0
        %293 = vmatprep.subr.bf16.mxu0 0
        %294 = vmatpush1.bf16.msra.mxu0 0
        %295 = vmatprep.mubr.bf16.mxu0 0
        %296 = vmatmul.mubr.bf16.gmra.mrb[0].mxu0 %v198
        %v297 = vpop.f32.mrb[0].mxu0
        %v298 = vadd.f32 0.0, %v297
        %v299 = vpop.f32.mrb[0].mxu0
        %v300 = vpop.f32.mrb[0].mxu0
        %v301 = vpop.f32.mrb[0].mxu0
        %302 = vdwg.mxu0
        %v303 = vxor.u32 %v298, 2147483648
        %v304 = vmul.f32 %v303, 1.442695
        %v305 = vpow.pop %v304
        %v306 = vadd.f32 %v305, 1.0
        %v307 = vrcp.pop %v306
        %v308 = vmul.f32 1.0, %v307
        %v309 = vmul.f32 %v298, %v308
        %v310 = vpack.c.bf16 %v309, %v309
        %v311 = vld [vmem:[#allocation4] sm:$0xf]
        %v312 = vld [vmem:[#allocation4 + $0x4] sm:$0xf]
        %v313 = vld [vmem:[#allocation4 + $0x8] sm:$0xf]
        %v314 = vld [vmem:[#allocation4 + $0xc] sm:$0xf]
        %v315 = vld [vmem:[#allocation4 + $0x10] sm:$0xf]
        %v316 = vld [vmem:[#allocation4 + $0x14] sm:$0xf]
        %v317 = vld [vmem:[#allocation4 + $0x18] sm:$0xf]
        %v318 = vld [vmem:[#allocation4 + $0x1c] sm:$0xf]
        %v319 = vld [vmem:[#allocation4 + $0x20] sm:$0xf]
        %v320 = vld [vmem:[#allocation4 + $0x24] sm:$0xf]
        %v321 = vld [vmem:[#allocation4 + $0x28] sm:$0xf]
        %v322 = vld [vmem:[#allocation4 + $0x2c] sm:$0xf]
        %v323 = vld [vmem:[#allocation4 + $0x30] sm:$0xf]
        %v324 = vld [vmem:[#allocation4 + $0x34] sm:$0xf]
        %v325 = vld [vmem:[#allocation4 + $0x38] sm:$0xf]
        %v326 = vld [vmem:[#allocation4 + $0x3c] sm:$0xf]
        %v343 = vunpack.c.l.b16 %v311
        %v344 = vunpack.c.l.b16 %v312
        %v345 = vunpack.c.l.b16 %v313
        %v346 = vunpack.c.l.b16 %v314
        %v347 = vunpack.c.l.b16 %v315
        %v348 = vunpack.c.l.b16 %v316
        %v349 = vunpack.c.l.b16 %v317
        %v350 = vunpack.c.l.b16 %v318
        %v351 = vunpack.c.l.b16 %v319
        %v352 = vunpack.c.l.b16 %v320
        %v353 = vunpack.c.l.b16 %v321
        %v354 = vunpack.c.l.b16 %v322
        %v355 = vunpack.c.l.b16 %v323
        %v356 = vunpack.c.l.b16 %v324
        %v357 = vunpack.c.l.b16 %v325
        %v358 = vunpack.c.l.b16 %v326
        %v359 = vpack.c.b16 %v344, %v343
        %v360 = vpack.c.b16 %v346, %v345
        %v361 = vpack.c.b16 %v348, %v347
        %v362 = vpack.c.b16 %v350, %v349
        %v363 = vpack.c.b16 %v352, %v351
        %v364 = vpack.c.b16 %v354, %v353
        %v365 = vpack.c.b16 %v356, %v355
        %v366 = vpack.c.b16 %v358, %v357
        %375 = vmatprep.subr.bf16.mxu0 0
        %376 = vmatpush1.bf16.msra.mxu0 %v359
        %377 = vmatprep.subr.bf16.mxu0 0
        %378 = vmatpush1.bf16.msra.mxu0 %v360
        %379 = vmatprep.subr.bf16.mxu0 0
        %380 = vmatpush1.bf16.msra.mxu0 %v361
        %381 = vmatprep.subr.bf16.mxu0 0
        %382 = vmatpush1.bf16.msra.mxu0 %v362
        %383 = vmatprep.subr.bf16.mxu0 0
        %384 = vmatpush1.bf16.msra.mxu0 %v363
        %385 = vmatprep.subr.bf16.mxu0 0
        %386 = vmatpush1.bf16.msra.mxu0 %v364
        %387 = vmatprep.subr.bf16.mxu0 0
        %388 = vmatpush1.bf16.msra.mxu0 %v365
        %389 = vmatprep.subr.bf16.mxu0 0
        %390 = vmatpush1.bf16.msra.mxu0 %v366
        %391 = vmatprep.subr.bf16.mxu0 0
        %392 = vmatpush1.bf16.msra.mxu0 0
        %393 = vmatprep.subr.bf16.mxu0 0
        %394 = vmatpush1.bf16.msra.mxu0 0
        %395 = vmatprep.subr.bf16.mxu0 0
        %396 = vmatpush1.bf16.msra.mxu0 0
        %397 = vmatprep.subr.bf16.mxu0 0
        %398 = vmatpush1.bf16.msra.mxu0 0
        %399 = vmatprep.subr.bf16.mxu0 0
        %400 = vmatpush1.bf16.msra.mxu0 0
        %401 = vmatprep.subr.bf16.mxu0 0
        %402 = vmatpush1.bf16.msra.mxu0 0
        %403 = vmatprep.subr.bf16.mxu0 0
        %404 = vmatpush1.bf16.msra.mxu0 0
        %405 = vmatprep.subr.bf16.mxu0 0
        %406 = vmatpush1.bf16.msra.mxu0 0
        %407 = vmatprep.mubr.bf16.mxu0 0
        %408 = vmatmul.mubr.bf16.gmra.mrb[0].mxu0 %v310
        %v409 = vpop.f32.mrb[0].mxu0
        %v410 = vadd.f32 0.0, %v409
        %v411 = vpop.f32.mrb[0].mxu0
        %v412 = vpop.f32.mrb[0].mxu0
        %v413 = vpop.f32.mrb[0].mxu0
        %414 = vdwg.mxu0
        %v415 = vadd.f32 %v197, %v410
        %416 = vst [vmem:[%s195] sm:$0xff] %v415
        %p417 = scmp.lt.s32.totalorder %s16, 1
        %s418 = scalar_select %p417, %s16, 1
        %s419 = smul.addr %s418, 8
        %s420 = scalar_lea.vmem %s3, %s419
        // Predicated region
        $region41: #{residual_block_prepared.1} parent=31 // pred_check
          %p421 = pneg %p102
        $region42: #{residual_block_prepared.1} parent=31 // pred_check_branch
          %423 = sbr.rel (%p421) target = $region44
        $region43: #{residual_block_prepared.1} parent=31 // pred_region
          _
        $region44: #{residual_block_prepared.1} parent=31 // pred_fallthru
          _
      $region32: #{residual_block_prepared.1} parent=5 // pred_fallthru
        _
      %p424 = scmp.le.s32.totalorder 2, %s11
      // Predicated region
      $region45: #{residual_block_prepared.1} parent=5 // pred_check
        %p425 = pneg %p424
      $region46: #{residual_block_prepared.1} parent=5 // pred_check_branch
        %427 = sbr.rel (%p425) target = $region48
      $region47: #{residual_block_prepared.1} parent=5 // pred_region
        %s428 = ssub.s32 %s11, 2
        // Predicated region
        $region49: #{residual_block_prepared.1} parent=47 // pred_check
          %p429 = pneg %p108
        $region50: #{residual_block_prepared.1} parent=47 // pred_check_branch
          %431 = sbr.rel (%p429) target = $region52
        $region51: #{residual_block_prepared.1} parent=47 // pred_region
          %p432 = scmp.lt.s32.totalorder %s17, 1
          %s433 = scalar_select %p432, %s17, 1
          %s434 = smul.addr %s433, 8
          %s435 = scalar_lea.vmem %s3, %s434
        $region52: #{residual_block_prepared.1} parent=47 // pred_fallthru
          _
      $region48: #{residual_block_prepared.1} parent=5 // pred_fallthru
        _
    $region6: #{residual_block_prepared.1} parent=1 // loop_footer
      %s15 = sadd.s32 1, %s11
    $region7: #{residual_block_prepared.1} parent=1 // loop_footer_branch
      %10 = sbr.rel target = $region3
    $region8: #{residual_block_prepared.1} parent=1 // loop_exit
      _
    %436 = vsyncpa [#allocation3], 1
    %s437 = scalar_lea.sflag [#allocation3], 1
    %438 = vsyncpa %s437, 1
    %439 = vsyncpa [#allocation5], 1

</llo_original>
